<compile_context>
chip_gen: v7x
topology: tpu7x:2x2x1
jax: 0.10.0
libtpu: 0.0.40
codegen_flags: <defaults>
</compile_context>

<pallas_src>
import math
from functools import partial

import jax
import jax.numpy as jnp
from jax import lax
from jax.experimental import pallas as pl
from jax.experimental.pallas import tpu as pltpu


def _mha_kernel(x_ref, wqkv_ref, out_ref, *, heads_num, head_size, d_model):
    # x_ref:    (1, T, D)  one batch element (f32)
    # wqkv_ref: (D, 3D)    fused [Wq | Wk | Wv], bf16, 1/sqrt(Hs) folded into Wq
    # out_ref:  (1, T, D)  per-head outputs concatenated along the feature dim
    T = x_ref.shape[1]
    D = d_model

    # One fused, full-width QKV projection on the MXU (bf16 in, f32 accumulate).
    x = x_ref[0].astype(jnp.bfloat16)                                      # (T, D)
    qkv = jnp.dot(x, wqkv_ref[...], preferred_element_type=jnp.float32)    # (T, 3D)

    # D-aligned slices; cast the attention-matmul operands to bf16 once.
    q = qkv[:, 0 * D:1 * D].astype(jnp.bfloat16)                           # (T, D)
    k = qkv[:, 1 * D:2 * D].astype(jnp.bfloat16)                           # (T, D)
    v = qkv[:, 2 * D:3 * D].astype(jnp.bfloat16)                           # (T, D)

    # Causal mask built in-kernel (module's registered buffer is tril(ones));
    # removes the (T,T) f32 DMA + permanent VMEM residency.
    row = lax.broadcasted_iota(jnp.int32, (T, T), 0)
    col = lax.broadcasted_iota(jnp.int32, (T, T), 1)
    masked_out = col > row                                                  # (T, T)
    neg = jnp.float32(-1e30)

    for h in range(heads_num):                                              # static unroll
        sl = slice(h * head_size, (h + 1) * head_size)
        qh, kh, vh = q[:, sl], k[:, sl], v[:, sl]                           # (T, Hs) bf16

        # Scale is already folded into Wq in the wrapper.
        scores = jnp.dot(qh, kh.T, preferred_element_type=jnp.float32)      # (T, T) f32
        scores = jnp.where(masked_out, neg, scores)
        scores = scores - jnp.max(scores, axis=-1, keepdims=True)
        p = jnp.exp(scores)                                                 # f32 softmax math
        inv_l = pl.reciprocal(jnp.sum(p, axis=-1, keepdims=True), approx=True)

        oh = jnp.dot(p.astype(jnp.bfloat16), vh,
                     preferred_element_type=jnp.float32) * inv_l            # (T, Hs) f32

        # Immediate store bounds live ranges (no end-of-loop concat/relayout);
        # the HBM writeback remains one dense (T, D) slab.
        out_ref[0, :, sl] = oh.astype(out_ref.dtype)


def multi_head_attention_forward(x, wqkv_bf16, *, heads_num):
    """x: (B, T, D) f32; wqkv_bf16: (D, 3D) fused bf16 weight (scale folded into Wq)."""
    B, T, D = x.shape
    assert D % heads_num == 0
    assert wqkv_bf16.shape == (D, 3 * D)
    head_size = D // heads_num

    kernel = partial(_mha_kernel, heads_num=heads_num, head_size=head_size, d_model=D)

    # Size scoped VMEM to the actual residency: resident bf16 fused weight,
    # double-buffered x / out slabs, plus f32 qkv & score temporaries.
    xbytes = jnp.dtype(x.dtype).itemsize
    resident = (wqkv_bf16.size * 2          # fused bf16 weight (resident)
                + 2 * T * D * xbytes        # double-buffered x block
                + 2 * T * D * xbytes        # double-buffered out block
                + 3 * T * D * 4             # f32 qkv temp
                + 3 * T * T * 4)            # scores / probs / mask temps
    vmem_limit = min(int(resident * 2) + (4 << 20), 100 << 20)

    return pl.pallas_call(
        kernel,
        out_shape=jax.ShapeDtypeStruct((B, T, D), x.dtype),
        grid=(B,),
        in_specs=[
            pl.BlockSpec((1, T, D), lambda b: (b, 0, 0)),      # x: one batch slab
            pl.BlockSpec((D, 3 * D), lambda b: (0, 0)),        # fused Wqkv, VMEM-resident
        ],
        out_specs=pl.BlockSpec((1, T, D), lambda b: (b, 0, 0)),
        compiler_params=pltpu.CompilerParams(
            dimension_semantics=("parallel",),
            vmem_limit_bytes=vmem_limit,
        ),
    )(x, wqkv_bf16)


def _reference_mha(x, wq_heads, wk_heads, wv_heads, mask, *, heads_num, head_size):
    """Pure-JAX mirror of the PyTorch module (per-head Linear weights, torch layout)."""
    B, T, D = x.shape
    outs = []
    for h in range(heads_num):
        q = x @ wq_heads[h].T
        k = x @ wk_heads[h].T
        v = x @ wv_heads[h].T
        w = (q @ jnp.swapaxes(k, -1, -2)) * (1.0 / math.sqrt(head_size))
        w = jnp.where(mask[:T, :T] == 0, -jnp.inf, w)
        w = jax.nn.softmax(w, axis=-1)
        outs.append(w @ v)
    return jnp.concatenate(outs, axis=-1)


if __name__ == "__main__":
    # Small shapes consistent with the module: batch=2, seq=8, hidden=32, 4 heads.
    d_model = 32
    heads_num = 4
    head_size = d_model // heads_num
    context_length = 16
    B, T = 2, 8

    key = jax.random.PRNGKey(0)
    kx, kq, kk, kv = jax.random.split(key, 4)

    x = jax.random.normal(kx, (B, T, d_model), dtype=jnp.float32)

    # Per-head nn.Linear(d_model, head_size, bias=False) weights, torch layout
    # (head_size, d_model), init ~ U(-1/sqrt(in), 1/sqrt(in)).
    bound = 1.0 / math.sqrt(d_model)
    wq_heads = jax.random.uniform(kq, (heads_num, head_size, d_model),
                                  jnp.float32, -bound, bound)
    wk_heads = jax.random.uniform(kk, (heads_num, head_size, d_model),
                                  jnp.float32, -bound, bound)
    wv_heads = jax.random.uniform(kv, (heads_num, head_size, d_model),
                                  jnp.float32, -bound, bound)

    # Causal mask buffer, as the module expects (tril of ones) -- only used by
    # the reference; the kernel rebuilds it with an iota compare.
    mask = jnp.tril(jnp.ones((context_length, context_length), dtype=jnp.float32))

    # Static weight prep: per-head torch-layout weights -> combined (D, D)
    # matrices so q_full = x @ Wq and head h lives in columns [h*Hs, (h+1)*Hs);
    # fold 1/sqrt(head_size) into Wq; fuse into one (D, 3D) bf16 weight.
    scale = 1.0 / math.sqrt(head_size)
    wq_comb = jnp.concatenate([wq_heads[h].T for h in range(heads_num)], axis=-1)
    wk_comb = jnp.concatenate([wk_heads[h].T for h in range(heads_num)], axis=-1)
    wv_comb = jnp.concatenate([wv_heads[h].T for h in range(heads_num)], axis=-1)
    wqkv = jnp.concatenate([wq_comb * scale, wk_comb, wv_comb], axis=-1)
    wqkv_bf16 = wqkv.astype(jnp.bfloat16)

    out = multi_head_attention_forward(x, wqkv_bf16, heads_num=heads_num)
    out = jax.block_until_ready(out)

    ref = _reference_mha(x, wq_heads, wk_heads, wv_heads, mask,
                         heads_num=heads_num, head_size=head_size)

    assert out.shape == (B, T, d_model)
    # bf16 matmuls + approx reciprocal vs the f32 reference: loosened tolerance.
    assert jnp.allclose(out, ref, atol=2e-2, rtol=2e-2), "mismatch vs reference"

    print("KERNEL_OK")
</pallas_src>

<mosaic_0001>
module attributes {stable_mosaic.version = 11 : i64} {
  func.func @_mha_kernel(%arg0: i32, %arg1: memref<1x8x32xf32, #tpu.memory_space<vmem>>, %arg2: memref<32x96xbf16, #tpu.memory_space<vmem>>, %arg3: memref<1x8x32xf32, #tpu.memory_space<vmem>>) attributes {dimension_semantics = [#tpu.dimension_semantics<parallel>], iteration_bounds = array<i64: 2>, scalar_prefetch = 0 : i64, scratch_operands = 0 : i64, tpu.core_type = #tpu.core_type<tc>, window_params = [{transform_indices = @transform_0, window_bounds = array<i64: 1, 8, 32>}, {pipeline_mode = #tpu.pipeline_mode<synchronous>, transform_indices = @transform_1, window_bounds = array<i64: 32, 96>}, {transform_indices = @transform_2, window_bounds = array<i64: 1, 8, 32>}]} {
    %c0 = arith.constant 0 : index
    %c0_0 = arith.constant 0 : index
    %c0_1 = arith.constant 0 : index
    %0 = vector.load %arg1[%c0, %c0_0, %c0_1] : memref<1x8x32xf32, #tpu.memory_space<vmem>>, vector<1x8x32xf32>
    %1 = vector.shape_cast %0 : vector<1x8x32xf32> to vector<8x32xf32>
    %2 = arith.truncf %1 : vector<8x32xf32> to vector<8x32xbf16>
    %c0_2 = arith.constant 0 : index
    %c0_3 = arith.constant 0 : index
    %3 = vector.load %arg2[%c0_2, %c0_3] : memref<32x96xbf16, #tpu.memory_space<vmem>>, vector<32x96xbf16>
    %cst = arith.constant dense<0.000000e+00> : vector<8x96xf32>
    %4 = tpu.matmul %2, %3, %cst {dimension_numbers = #tpu.dot_dimension_numbers<[1], [0], [0], [1], [0, 0, 1, 1], [], []>} : vector<8x32xbf16>, vector<32x96xbf16>, vector<8x96xf32> -> vector<8x96xf32>
    %5 = vector.extract_strided_slice %4 {offsets = [0, 0], sizes = [8, 32], strides = [1, 1]} : vector<8x96xf32> to vector<8x32xf32>
    %6 = arith.truncf %5 : vector<8x32xf32> to vector<8x32xbf16>
    %7 = vector.extract_strided_slice %4 {offsets = [0, 32], sizes = [8, 32], strides = [1, 1]} : vector<8x96xf32> to vector<8x32xf32>
    %8 = arith.truncf %7 : vector<8x32xf32> to vector<8x32xbf16>
    %9 = vector.extract_strided_slice %4 {offsets = [0, 64], sizes = [8, 32], strides = [1, 1]} : vector<8x96xf32> to vector<8x32xf32>
    %10 = arith.truncf %9 : vector<8x32xf32> to vector<8x32xbf16>
    %11 = tpu.iota {dimensions = array<i32: 0>} : vector<8x8xi32>
    %12 = tpu.iota {dimensions = array<i32: 1>} : vector<8x8xi32>
    %13 = arith.cmpi sgt, %12, %11 : vector<8x8xi32>
    %14 = vector.extract_strided_slice %6 {offsets = [0, 0], sizes = [8, 8], strides = [1, 1]} : vector<8x32xbf16> to vector<8x8xbf16>
    %15 = vector.extract_strided_slice %8 {offsets = [0, 0], sizes = [8, 8], strides = [1, 1]} : vector<8x32xbf16> to vector<8x8xbf16>
    %16 = vector.extract_strided_slice %10 {offsets = [0, 0], sizes = [8, 8], strides = [1, 1]} : vector<8x32xbf16> to vector<8x8xbf16>
    %17 = tpu.transpose %15, [1, 0] : vector<8x8xbf16> -> vector<8x8xbf16>
    %cst_4 = arith.constant dense<0.000000e+00> : vector<8x8xf32>
    %18 = tpu.matmul %14, %17, %cst_4 {dimension_numbers = #tpu.dot_dimension_numbers<[1], [0], [0], [1], [0, 0, 1, 1], [], []>} : vector<8x8xbf16>, vector<8x8xbf16>, vector<8x8xf32> -> vector<8x8xf32>
    %cst_5 = arith.constant -1.000000e+30 : f32
    %19 = vector.broadcast %cst_5 : f32 to vector<8x8xf32>
    %20 = arith.select %13, %19, %18 : vector<8x8xi1>, vector<8x8xf32>
    %cst_6 = arith.constant dense<0xFF800000> : vector<8xf32>
    %21 = vector.multi_reduction <maximumf>, %20, %cst_6 [1] : vector<8x8xf32> to vector<8xf32>
    %22 = vector.shape_cast %21 : vector<8xf32> to vector<8x1xf32>
    %23 = vector.broadcast %22 : vector<8x1xf32> to vector<8x8xf32>
    %24 = arith.subf %20, %23 : vector<8x8xf32>
    %25 = math.exp %24 : vector<8x8xf32>
    %cst_7 = arith.constant dense<0.000000e+00> : vector<8xf32>
    %26 = vector.multi_reduction <add>, %25, %cst_7 [1] : vector<8x8xf32> to vector<8xf32>
    %27 = vector.shape_cast %26 : vector<8xf32> to vector<8x1xf32>
    %28 = tpu.reciprocal %27 {approx = true} : vector<8x1xf32> -> vector<8x1xf32>
    %29 = arith.truncf %25 : vector<8x8xf32> to vector<8x8xbf16>
    %cst_8 = arith.constant dense<0.000000e+00> : vector<8x8xf32>
    %30 = tpu.matmul %29, %16, %cst_8 {dimension_numbers = #tpu.dot_dimension_numbers<[1], [0], [0], [1], [0, 0, 1, 1], [], []>} : vector<8x8xbf16>, vector<8x8xbf16>, vector<8x8xf32> -> vector<8x8xf32>
    %31 = vector.broadcast %28 : vector<8x1xf32> to vector<8x8xf32>
    %32 = arith.mulf %30, %31 : vector<8x8xf32>
    %c0_9 = arith.constant 0 : index
    %c0_10 = arith.constant 0 : index
    %c0_11 = arith.constant 0 : index
    %33 = vector.load %arg3[%c0_9, %c0_10, %c0_11] : memref<1x8x32xf32, #tpu.memory_space<vmem>>, vector<1x8x8xf32>
    %34 = vector.shape_cast %33 : vector<1x8x8xf32> to vector<8x8xf32>
    %35 = vector.shape_cast %32 : vector<8x8xf32> to vector<1x8x8xf32>
    tpu.vector_store %arg3[%c0_9, %c0_10, %c0_11], %35 {strides = array<i32>} : memref<1x8x32xf32, #tpu.memory_space<vmem>>, vector<1x8x8xf32>,
    %36 = vector.extract_strided_slice %6 {offsets = [0, 8], sizes = [8, 8], strides = [1, 1]} : vector<8x32xbf16> to vector<8x8xbf16>
    %37 = vector.extract_strided_slice %8 {offsets = [0, 8], sizes = [8, 8], strides = [1, 1]} : vector<8x32xbf16> to vector<8x8xbf16>
    %38 = vector.extract_strided_slice %10 {offsets = [0, 8], sizes = [8, 8], strides = [1, 1]} : vector<8x32xbf16> to vector<8x8xbf16>
    %39 = tpu.transpose %37, [1, 0] : vector<8x8xbf16> -> vector<8x8xbf16>
    %cst_12 = arith.constant dense<0.000000e+00> : vector<8x8xf32>
    %40 = tpu.matmul %36, %39, %cst_12 {dimension_numbers = #tpu.dot_dimension_numbers<[1], [0], [0], [1], [0, 0, 1, 1], [], []>} : vector<8x8xbf16>, vector<8x8xbf16>, vector<8x8xf32> -> vector<8x8xf32>
    %cst_13 = arith.constant -1.000000e+30 : f32
    %41 = vector.broadcast %cst_13 : f32 to vector<8x8xf32>
    %42 = arith.select %13, %41, %40 : vector<8x8xi1>, vector<8x8xf32>
    %cst_14 = arith.constant dense<0xFF800000> : vector<8xf32>
    %43 = vector.multi_reduction <maximumf>, %42, %cst_14 [1] : vector<8x8xf32> to vector<8xf32>
    %44 = vector.shape_cast %43 : vector<8xf32> to vector<8x1xf32>
    %45 = vector.broadcast %44 : vector<8x1xf32> to vector<8x8xf32>
    %46 = arith.subf %42, %45 : vector<8x8xf32>
    %47 = math.exp %46 : vector<8x8xf32>
    %cst_15 = arith.constant dense<0.000000e+00> : vector<8xf32>
    %48 = vector.multi_reduction <add>, %47, %cst_15 [1] : vector<8x8xf32> to vector<8xf32>
    %49 = vector.shape_cast %48 : vector<8xf32> to vector<8x1xf32>
    %50 = tpu.reciprocal %49 {approx = true} : vector<8x1xf32> -> vector<8x1xf32>
    %51 = arith.truncf %47 : vector<8x8xf32> to vector<8x8xbf16>
    %cst_16 = arith.constant dense<0.000000e+00> : vector<8x8xf32>
    %52 = tpu.matmul %51, %38, %cst_16 {dimension_numbers = #tpu.dot_dimension_numbers<[1], [0], [0], [1], [0, 0, 1, 1], [], []>} : vector<8x8xbf16>, vector<8x8xbf16>, vector<8x8xf32> -> vector<8x8xf32>
    %53 = vector.broadcast %50 : vector<8x1xf32> to vector<8x8xf32>
    %54 = arith.mulf %52, %53 : vector<8x8xf32>
    %c0_17 = arith.constant 0 : index
    %c0_18 = arith.constant 0 : index
    %c8 = arith.constant 8 : index
    %55 = vector.load %arg3[%c0_17, %c0_18, %c8] : memref<1x8x32xf32, #tpu.memory_space<vmem>>, vector<1x8x8xf32>
    %56 = vector.shape_cast %55 : vector<1x8x8xf32> to vector<8x8xf32>
    %57 = vector.shape_cast %54 : vector<8x8xf32> to vector<1x8x8xf32>
    tpu.vector_store %arg3[%c0_17, %c0_18, %c8], %57 {strides = array<i32>} : memref<1x8x32xf32, #tpu.memory_space<vmem>>, vector<1x8x8xf32>,
    %58 = vector.extract_strided_slice %6 {offsets = [0, 16], sizes = [8, 8], strides = [1, 1]} : vector<8x32xbf16> to vector<8x8xbf16>
    %59 = vector.extract_strided_slice %8 {offsets = [0, 16], sizes = [8, 8], strides = [1, 1]} : vector<8x32xbf16> to vector<8x8xbf16>
    %60 = vector.extract_strided_slice %10 {offsets = [0, 16], sizes = [8, 8], strides = [1, 1]} : vector<8x32xbf16> to vector<8x8xbf16>
    %61 = tpu.transpose %59, [1, 0] : vector<8x8xbf16> -> vector<8x8xbf16>
    %cst_19 = arith.constant dense<0.000000e+00> : vector<8x8xf32>
    %62 = tpu.matmul %58, %61, %cst_19 {dimension_numbers = #tpu.dot_dimension_numbers<[1], [0], [0], [1], [0, 0, 1, 1], [], []>} : vector<8x8xbf16>, vector<8x8xbf16>, vector<8x8xf32> -> vector<8x8xf32>
    %cst_20 = arith.constant -1.000000e+30 : f32
    %63 = vector.broadcast %cst_20 : f32 to vector<8x8xf32>
    %64 = arith.select %13, %63, %62 : vector<8x8xi1>, vector<8x8xf32>
    %cst_21 = arith.constant dense<0xFF800000> : vector<8xf32>
    %65 = vector.multi_reduction <maximumf>, %64, %cst_21 [1] : vector<8x8xf32> to vector<8xf32>
    %66 = vector.shape_cast %65 : vector<8xf32> to vector<8x1xf32>
    %67 = vector.broadcast %66 : vector<8x1xf32> to vector<8x8xf32>
    %68 = arith.subf %64, %67 : vector<8x8xf32>
    %69 = math.exp %68 : vector<8x8xf32>
    %cst_22 = arith.constant dense<0.000000e+00> : vector<8xf32>
    %70 = vector.multi_reduction <add>, %69, %cst_22 [1] : vector<8x8xf32> to vector<8xf32>
    %71 = vector.shape_cast %70 : vector<8xf32> to vector<8x1xf32>
    %72 = tpu.reciprocal %71 {approx = true} : vector<8x1xf32> -> vector<8x1xf32>
    %73 = arith.truncf %69 : vector<8x8xf32> to vector<8x8xbf16>
    %cst_23 = arith.constant dense<0.000000e+00> : vector<8x8xf32>
    %74 = tpu.matmul %73, %60, %cst_23 {dimension_numbers = #tpu.dot_dimension_numbers<[1], [0], [0], [1], [0, 0, 1, 1], [], []>} : vector<8x8xbf16>, vector<8x8xbf16>, vector<8x8xf32> -> vector<8x8xf32>
    %75 = vector.broadcast %72 : vector<8x1xf32> to vector<8x8xf32>
    %76 = arith.mulf %74, %75 : vector<8x8xf32>
    %c0_24 = arith.constant 0 : index
    %c0_25 = arith.constant 0 : index
    %c16 = arith.constant 16 : index
    %77 = vector.load %arg3[%c0_24, %c0_25, %c16] : memref<1x8x32xf32, #tpu.memory_space<vmem>>, vector<1x8x8xf32>
    %78 = vector.shape_cast %77 : vector<1x8x8xf32> to vector<8x8xf32>
    %79 = vector.shape_cast %76 : vector<8x8xf32> to vector<1x8x8xf32>
    tpu.vector_store %arg3[%c0_24, %c0_25, %c16], %79 {strides = array<i32>} : memref<1x8x32xf32, #tpu.memory_space<vmem>>, vector<1x8x8xf32>,
    %80 = vector.extract_strided_slice %6 {offsets = [0, 24], sizes = [8, 8], strides = [1, 1]} : vector<8x32xbf16> to vector<8x8xbf16>
    %81 = vector.extract_strided_slice %8 {offsets = [0, 24], sizes = [8, 8], strides = [1, 1]} : vector<8x32xbf16> to vector<8x8xbf16>
    %82 = vector.extract_strided_slice %10 {offsets = [0, 24], sizes = [8, 8], strides = [1, 1]} : vector<8x32xbf16> to vector<8x8xbf16>
    %83 = tpu.transpose %81, [1, 0] : vector<8x8xbf16> -> vector<8x8xbf16>
    %cst_26 = arith.constant dense<0.000000e+00> : vector<8x8xf32>
    %84 = tpu.matmul %80, %83, %cst_26 {dimension_numbers = #tpu.dot_dimension_numbers<[1], [0], [0], [1], [0, 0, 1, 1], [], []>} : vector<8x8xbf16>, vector<8x8xbf16>, vector<8x8xf32> -> vector<8x8xf32>
    %cst_27 = arith.constant -1.000000e+30 : f32
    %85 = vector.broadcast %cst_27 : f32 to vector<8x8xf32>
    %86 = arith.select %13, %85, %84 : vector<8x8xi1>, vector<8x8xf32>
    %cst_28 = arith.constant dense<0xFF800000> : vector<8xf32>
    %87 = vector.multi_reduction <maximumf>, %86, %cst_28 [1] : vector<8x8xf32> to vector<8xf32>
    %88 = vector.shape_cast %87 : vector<8xf32> to vector<8x1xf32>
    %89 = vector.broadcast %88 : vector<8x1xf32> to vector<8x8xf32>
    %90 = arith.subf %86, %89 : vector<8x8xf32>
    %91 = math.exp %90 : vector<8x8xf32>
    %cst_29 = arith.constant dense<0.000000e+00> : vector<8xf32>
    %92 = vector.multi_reduction <add>, %91, %cst_29 [1] : vector<8x8xf32> to vector<8xf32>
    %93 = vector.shape_cast %92 : vector<8xf32> to vector<8x1xf32>
    %94 = tpu.reciprocal %93 {approx = true} : vector<8x1xf32> -> vector<8x1xf32>
    %95 = arith.truncf %91 : vector<8x8xf32> to vector<8x8xbf16>
    %cst_30 = arith.constant dense<0.000000e+00> : vector<8x8xf32>
    %96 = tpu.matmul %95, %82, %cst_30 {dimension_numbers = #tpu.dot_dimension_numbers<[1], [0], [0], [1], [0, 0, 1, 1], [], []>} : vector<8x8xbf16>, vector<8x8xbf16>, vector<8x8xf32> -> vector<8x8xf32>
    %97 = vector.broadcast %94 : vector<8x1xf32> to vector<8x8xf32>
    %98 = arith.mulf %96, %97 : vector<8x8xf32>
    %c0_31 = arith.constant 0 : index
    %c0_32 = arith.constant 0 : index
    %c24 = arith.constant 24 : index
    %99 = vector.load %arg3[%c0_31, %c0_32, %c24] : memref<1x8x32xf32, #tpu.memory_space<vmem>>, vector<1x8x8xf32>
    %100 = vector.shape_cast %99 : vector<1x8x8xf32> to vector<8x8xf32>
    %101 = vector.shape_cast %98 : vector<8x8xf32> to vector<1x8x8xf32>
    tpu.vector_store %arg3[%c0_31, %c0_32, %c24], %101 {strides = array<i32>} : memref<1x8x32xf32, #tpu.memory_space<vmem>>, vector<1x8x8xf32>,
    return
  }
  func.func @transform_0(%arg0: i32) -> (i32, i32, i32) {
    %c0_i32 = arith.constant 0 : i32
    %c0_i32_0 = arith.constant 0 : i32
    %c0_i32_1 = arith.constant 0 : i32
    return %arg0, %c0_i32, %c0_i32_0 : i32, i32, i32
  }
  func.func @transform_1(%arg0: i32) -> (i32, i32) {
    %c0_i32 = arith.constant 0 : i32
    %c0_i32_0 = arith.constant 0 : i32
    %c0_i32_1 = arith.constant 0 : i32
    return %c0_i32, %c0_i32_0 : i32, i32
  }
  func.func @transform_2(%arg0: i32) -> (i32, i32, i32) {
    %c0_i32 = arith.constant 0 : i32
    %c0_i32_0 = arith.constant 0 : i32
    %c0_i32_1 = arith.constant 0 : i32
    return %arg0, %c0_i32, %c0_i32_0 : i32, i32, i32
  }
}

</mosaic_0001>

<llo_original>
// kernel: tpu_custom_call.1
$region0: #{tpu_custom_call.1}
  #allocation0 [shape = 'u32[]', space=smem, size = 0x4, offset = 0x4, fixed_abs, tag = 'smem constant byte address 0x4 - core index']
  #allocation1 [shape = 'u32[144,128]{1,0:T(1,128)}', space=vmem, size = 0x12000, scoped, tag = 'internal scratch']
  %s0 = inlined_call_operand.hbm [shape: f32[2,8,32], index: 0, kind: input, shape index: {}]
  %s1 = inlined_call_operand.hbm [shape: bf16[32,96], index: 1, kind: input, shape index: {}]
  %s2 = inlined_call_operand.hbm [shape: f32[2,8,32], index: 2, kind: output, shape index: {}]
  %s3 = sld [smem:[#allocation0]]
  $region49: #{tpu_custom_call.1} parent=0
    _
  %s5 = ssub.s32 1, %s3
  %s6 = scalar_select 0, %s5, %s3
  $region1: #{tpu_custom_call.1} parent=0
    #allocation2 [shape = 'u8[8192]{0}', space=vmem, size = 0x2000, scoped, tag = 'input window, operand 0']
    #allocation3 [shape = 's32[2]{0}', space=sflag, size = 0x8, scoped, tag = 'scoped memory for tpu_custom_call.1']
    #allocation4 [shape = 's32[2]{0}', space=sflag, size = 0x8, scoped, tag = 'scoped memory for tpu_custom_call.1']
    #allocation5 [shape = 'u8[8192]{0}', space=vmem, size = 0x2000, scoped, tag = 'input window, operand 1, single buffered']
    #allocation6 [shape = 's32[1]{0}', space=sflag, size = 0x4, scoped, tag = 'scoped memory for tpu_custom_call.1']
    #allocation7 [shape = 'u8[8192]{0}', space=vmem, size = 0x2000, scoped, tag = 'output window, operand 0']
    %7 = vsyncpa [#allocation3], 0
    %s8 = scalar_lea.sflag [#allocation3], 1
    %9 = vsyncpa %s8, 0
    %10 = vsyncpa [#allocation6], 0
    %11 = vsyncpa [#allocation4], 0
    %s12 = scalar_lea.sflag [#allocation4], 1
    %13 = vsyncpa %s12, 0
    loop: start=0, step=1, limit=4
    $region2: #{tpu_custom_call.1} parent=1 // loop_pre_header
      _
    $region3: #{tpu_custom_call.1} parent=1 // loop_header
      %s15 = sphi 0, %s19
      %p16 = scmp.ge.s32.totalorder %s15, 4
      %s25 = sphi 0, %s27
      %s28 = sphi 0, %s25
      %s29 = sphi 0, %s28
      %s45 = sphi 0, %s29
      %s49 = sphi 0, %s49
      %s51 = sphi 0, %s49
      %s52 = sphi 0, %s51
      %s66 = sphi 0, %s52
      %s72 = sphi 0, %s74
      %s75 = sphi 0, %s72
      %s76 = sphi 0, %s75
      %s92 = sphi 0, %s76
    $region4: #{tpu_custom_call.1} parent=1 // loop_header_branch
      %18 = sbr.rel (%p16) target = $region8
    $region5: #{tpu_custom_call.1} parent=1 // loop_body
      %s20 = ssub.s32 %s15, 1
      %s21 = ssub.s32 %s15, 2
      %s22 = sadd.s32 %s15, 1
      %s23 = ssub.s32 %s15, %s22
      %p24 = scmp.eq.s32.totalorder %s23, 0
      %s26 = sadd.s32 %s25, 1
      %s27 = scalar_select %p24, %s25, %s26
      %p30 = pneg %p24
      %p31 = scmp.eq.s32.totalorder %s15, 1
      %p32 = por %p30, %p31
      %p33 = scmp.ne.s32.totalorder %s25, %s28
      %p34 = scmp.eq.s32.totalorder %s15, 0
      %p35 = por %p33, %p34
      %p36 = scmp.ne.s32.totalorder %s25, %s28
      %p37 = scmp.eq.s32.totalorder %s20, 1
      %p38 = por %p36, %p37
      %p39 = scmp.ne.s32.totalorder %s28, %s29
      %p40 = scmp.eq.s32.totalorder %s20, 0
      %p41 = por %p39, %p40
      %p42 = scmp.ne.s32.totalorder %s28, %s29
      %p43 = scmp.eq.s32.totalorder %s21, 1
      %p44 = por %p42, %p43
      %p46 = scmp.ne.s32.totalorder %s29, %s45
      %p47 = scmp.eq.s32.totalorder %s21, 0
      %p48 = por %p46, %p47
      %s50 = sadd.s32 %s49, 1
      %p53 = scmp.eq.s32.totalorder %s15, 1
      %p54 = scmp.ne.s32.totalorder %s49, %s51
      %p55 = scmp.eq.s32.totalorder %s15, 0
      %p56 = por %p54, %p55
      %p57 = scmp.ne.s32.totalorder %s49, %s51
      %p58 = scmp.eq.s32.totalorder %s20, 1
      %p59 = por %p57, %p58
      %p60 = scmp.ne.s32.totalorder %s51, %s52
      %p61 = scmp.eq.s32.totalorder %s20, 0
      %p62 = por %p60, %p61
      %p63 = scmp.ne.s32.totalorder %s51, %s52
      %p64 = scmp.eq.s32.totalorder %s21, 1
      %p65 = por %p63, %p64
      %p67 = scmp.ne.s32.totalorder %s52, %s66
      %p68 = scmp.eq.s32.totalorder %s21, 0
      %p69 = por %p67, %p68
      %s70 = ssub.s32 %s15, %s22
      %p71 = scmp.eq.s32.totalorder %s70, 0
      %s73 = sadd.s32 %s72, 1
      %s74 = scalar_select %p71, %s72, %s73
      %p77 = pneg %p71
      %p78 = scmp.eq.s32.totalorder %s15, 1
      %p79 = por %p77, %p78
      %p80 = scmp.ne.s32.totalorder %s72, %s75
      %p81 = scmp.eq.s32.totalorder %s15, 0
      %p82 = por %p80, %p81
      %p83 = scmp.ne.s32.totalorder %s72, %s75
      %p84 = scmp.eq.s32.totalorder %s20, 1
      %p85 = por %p83, %p84
      %p86 = scmp.ne.s32.totalorder %s75, %s76
      %p87 = scmp.eq.s32.totalorder %s20, 0
      %p88 = por %p86, %p87
      %p89 = scmp.ne.s32.totalorder %s75, %s76
      %p90 = scmp.eq.s32.totalorder %s21, 1
      %p91 = por %p89, %p90
      %p93 = scmp.ne.s32.totalorder %s76, %s92
      %p94 = scmp.eq.s32.totalorder %s21, 0
      %p95 = por %p93, %p94
      %p96 = scmp.le.s32.totalorder 1, %s15
      %p97 = scmp.lt.s32.totalorder %s15, 3
      %p98 = pnand %p96, %p97
      %p99 = pneg %p98
      // Predicated region
      $region9: #{tpu_custom_call.1} parent=5 // pred_check
        _
      $region10: #{tpu_custom_call.1} parent=5 // pred_check_branch
        %101 = sbr.rel (%p98) target = $region12
      $region11: #{tpu_custom_call.1} parent=5 // pred_region
        %s102 = ssub.s32 %s15, 1
        // Predicated region
        $region13: #{tpu_custom_call.1} parent=11 // pred_check
          %p103 = pneg %p62
        $region14: #{tpu_custom_call.1} parent=11 // pred_check_branch
          %105 = sbr.rel (%p103) target = $region16
        $region15: #{tpu_custom_call.1} parent=11 // pred_region
          %s107 = ssub.s32 256, 256
          %108 = vsyncadd [#allocation6], %s107
          %s109 = sshll.u32 [#allocation5], 4
          %s110 = int_to_ptr.vmem [resolvable:$true] %s109
          %115 = dma.hbm_to_vmem [thread:$0]  %s1, 256, %s110, [#allocation6], 64, 64, 4
        $region16: #{tpu_custom_call.1} parent=11 // pred_fallthru
          _
      $region12: #{tpu_custom_call.1} parent=5 // pred_fallthru
        _
      %p116 = scmp.lt.s32.totalorder %s15, 2
      // Predicated region
      $region17: #{tpu_custom_call.1} parent=5 // pred_check
        %p117 = pneg %p116
      $region18: #{tpu_custom_call.1} parent=5 // pred_check_branch
        %119 = sbr.rel (%p117) target = $region20
      $region19: #{tpu_custom_call.1} parent=5 // pred_region
        // Predicated region
        $region21: #{tpu_custom_call.1} parent=19 // pred_check
          %p120 = pneg %p35
        $region22: #{tpu_custom_call.1} parent=19 // pred_check_branch
          %122 = sbr.rel (%p120) target = $region24
        $region23: #{tpu_custom_call.1} parent=19 // pred_region
          %s123 = sand.u32 %s25, 1
          %s124 = scalar_lea.sflag [#allocation3], %s123
          %s125 = sand.u32 %s25, 1
          %s126 = smul.addr %s125, 8
          %s127 = scalar_lea.vmem [#allocation2], %s126
          %s129 = ssub.s32 128, 128
          %130 = vsyncadd %s124, %s129
          %s131 = smul.addr %s15, 128
          %s132 = scalar_lea.hbm %s0, %s131
          %s134 = sshll.u32 %s127, 4
          %s135 = int_to_ptr.vmem [resolvable:$true] %s134
          %137 = dma.hbm_to_vmem [thread:$0]  %s132, 128, %s135, %s124
        $region24: #{tpu_custom_call.1} parent=19 // pred_fallthru
          _
      $region20: #{tpu_custom_call.1} parent=5 // pred_fallthru
        _
      %p138 = scmp.le.s32.totalorder 1, %s15
      %p139 = scmp.lt.s32.totalorder %s15, 3
      %p140 = pnand %p138, %p139
      %p141 = pneg %p140
      // Predicated region
      $region25: #{tpu_custom_call.1} parent=5 // pred_check
        _
      $region26: #{tpu_custom_call.1} parent=5 // pred_check_branch
        %143 = sbr.rel (%p140) target = $region28
      $region27: #{tpu_custom_call.1} parent=5 // pred_region
        %s144 = ssub.s32 %s15, 1
        %s145 = sand.u32 %s28, 1
        %s146 = scalar_lea.sflag [#allocation3], %s145
        %s147 = sand.u32 %s28, 1
        %s148 = smul.addr %s147, 8
        %s149 = scalar_lea.vmem [#allocation2], %s148
        // Predicated region
        $region29: #{tpu_custom_call.1} parent=27 // pred_check
          %p150 = pneg %p41
        $region30: #{tpu_custom_call.1} parent=27 // pred_check_branch
          %152 = sbr.rel (%p150) target = $region32
        $region31: #{tpu_custom_call.1} parent=27 // pred_region
          %153 = dma.done %s146, 128
        $region32: #{tpu_custom_call.1} parent=27 // pred_fallthru
          _
        // Predicated region
        $region33: #{tpu_custom_call.1} parent=27 // pred_check
          %p154 = pneg %p62
        $region34: #{tpu_custom_call.1} parent=27 // pred_check_branch
          %156 = sbr.rel (%p154) target = $region36
        $region35: #{tpu_custom_call.1} parent=27 // pred_region
          %157 = dma.done [#allocation6], 256
        $region36: #{tpu_custom_call.1} parent=27 // pred_fallthru
          _
        %s158 = sand.u32 %s28, 1
        %s159 = scalar_lea.sflag [#allocation3], %s158
        %s160 = sand.u32 %s28, 1
        %s161 = smul.addr %s160, 8
        %s162 = scalar_lea.vmem [#allocation2], %s161
        %p163 = pneg %p41
        %p164 = pneg %p38
        %p165 = pneg %p62
        %p166 = pneg %p59
        %p167 = pneg %p88
        %p168 = pneg %p85
        %s169 = sand.u32 %s75, 1
        %s170 = scalar_lea.sflag [#allocation4], %s169
        %s171 = sand.u32 %s75, 1
        %s172 = smul.addr %s171, 8
        %s173 = scalar_lea.vmem [#allocation7], %s172
        %v175 = vld [vmem:[%s149] sm:$0xff]
        %v176 = vpack.c.bf16 %v175, %v175
        %v177 = vld [vmem:[#allocation5] sm:$0xf]
        %v178 = vld [vmem:[#allocation5 + $0x4] sm:$0xf]
        %v179 = vld [vmem:[#allocation5 + $0x8] sm:$0xf]
        %v180 = vld [vmem:[#allocation5 + $0xc] sm:$0xf]
        %v185 = vunpack.c.l.b16 %v177
        %v186 = vunpack.c.l.b16 %v178
        %v187 = vunpack.c.l.b16 %v179
        %v188 = vunpack.c.l.b16 %v180
        %v189 = vpack.c.b16 %v186, %v185
        %v190 = vpack.c.b16 %v188, %v187
        %vm193 = vcmask 261120
        %v195 = vsel %vm193, %v176, 0
        %197 = vmatprep.subr.bf16.mxu0 0
        %198 = vmatpush1.bf16.msra.mxu0 %v189
        %199 = vmatprep.subr.bf16.mxu0 0
        %200 = vmatpush1.bf16.msra.mxu0 %v190
        %201 = vmatprep.subr.bf16.mxu0 0
        %202 = vmatpush1.bf16.msra.mxu0 0
        %203 = vmatprep.subr.bf16.mxu0 0
        %204 = vmatpush1.bf16.msra.mxu0 0
        %205 = vmatprep.subr.bf16.mxu0 0
        %206 = vmatpush1.bf16.msra.mxu0 0
        %207 = vmatprep.subr.bf16.mxu0 0
        %208 = vmatpush1.bf16.msra.mxu0 0
        %209 = vmatprep.subr.bf16.mxu0 0
        %210 = vmatpush1.bf16.msra.mxu0 0
        %211 = vmatprep.subr.bf16.mxu0 0
        %212 = vmatpush1.bf16.msra.mxu0 0
        %213 = vmatprep.subr.bf16.mxu0 0
        %214 = vmatpush1.bf16.msra.mxu0 0
        %215 = vmatprep.subr.bf16.mxu0 0
        %216 = vmatpush1.bf16.msra.mxu0 0
        %217 = vmatprep.subr.bf16.mxu0 0
        %218 = vmatpush1.bf16.msra.mxu0 0
        %219 = vmatprep.subr.bf16.mxu0 0
        %220 = vmatpush1.bf16.msra.mxu0 0
        %221 = vmatprep.subr.bf16.mxu0 0
        %222 = vmatpush1.bf16.msra.mxu0 0
        %223 = vmatprep.subr.bf16.mxu0 0
        %224 = vmatpush1.bf16.msra.mxu0 0
        %225 = vmatprep.subr.bf16.mxu0 0
        %226 = vmatpush1.bf16.msra.mxu0 0
        %227 = vmatprep.subr.bf16.mxu0 0
        %228 = vmatpush1.bf16.msra.mxu0 0
        %229 = vmatprep.mubr.bf16.mxu0 0
        %230 = vmatmul.mubr.bf16.gmra.mrb[0].mxu0 %v195
        %v231 = vpop.f32.mrb[0].mxu0
        %v232 = vadd.f32 0.0, %v231
        %v233 = vpop.f32.mrb[0].mxu0
        %v234 = vpop.f32.mrb[0].mxu0
        %v235 = vpop.f32.mrb[0].mxu0
        %236 = vdwg.mxu0
        %v237 = vpack.c.bf16 %v232, %v232
        %v238 = vlaneseq
        %v239 = vshrl.u32 %v238, 7
        %v240 = vlaneseq
        %v241 = vand.u32 %v240, 127
        %vm242 = vcmp.gt.s32.totalorder %v241, %v239
        %244 = vrot.lane.b32.xlu0 %v237, 96
        %v245 = vpop.permute.xlu0 %244
        %vm246 = vcmask 64512
        %v248 = vsel %vm246, %v237, 0
        %v251 = vsel %vm246, %v245, 0
        %253 = vmatprep.subr.bf16.mxu0 0
        %254 = vmatpush1.bf16.xpose.msra.mxu0 %v251
        %255 = vmatprep.subr.bf16.mxu0 0
        %256 = vmatpush1.bf16.xpose.msra.mxu0 0
        %257 = vmatprep.subr.bf16.mxu0 0
        %258 = vmatpush1.bf16.xpose.msra.mxu0 0
        %259 = vmatprep.subr.bf16.mxu0 0
        %260 = vmatpush1.bf16.xpose.msra.mxu0 0
        %261 = vmatprep.subr.bf16.mxu0 0
        %262 = vmatpush1.bf16.xpose.msra.mxu0 0
        %263 = vmatprep.subr.bf16.mxu0 0
        %264 = vmatpush1.bf16.xpose.msra.mxu0 0
        %265 = vmatprep.subr.bf16.mxu0 0
        %266 = vmatpush1.bf16.xpose.msra.mxu0 0
        %267 = vmatprep.subr.bf16.mxu0 0
        %268 = vmatpush1.bf16.xpose.msra.mxu0 0
        %269 = vmatprep.subr.bf16.mxu0 0
        %270 = vmatpush1.bf16.xpose.msra.mxu0 0
        %271 = vmatprep.subr.bf16.mxu0 0
        %272 = vmatpush1.bf16.xpose.msra.mxu0 0
        %273 = vmatprep.subr.bf16.mxu0 0
        %274 = vmatpush1.bf16.xpose.msra.mxu0 0
        %275 = vmatprep.subr.bf16.mxu0 0
        %276 = vmatpush1.bf16.xpose.msra.mxu0 0
        %277 = vmatprep.subr.bf16.mxu0 0
        %278 = vmatpush1.bf16.xpose.msra.mxu0 0
        %279 = vmatprep.subr.bf16.mxu0 0
        %280 = vmatpush1.bf16.xpose.msra.mxu0 0
        %281 = vmatprep.subr.bf16.mxu0 0
        %282 = vmatpush1.bf16.xpose.msra.mxu0 0
        %283 = vmatprep.subr.bf16.mxu0 0
        %284 = vmatpush1.bf16.xpose.msra.mxu0 0
        %285 = vmatprep.mubr.bf16.mxu0 0
        %286 = vmatmul.mubr.bf16.gmra.mrb[0].mxu0 %v248
        %v287 = vpop.f32.mrb[0].mxu0
        %v288 = vadd.f32 0.0, %v287
        %v289 = vpop.f32.mrb[0].mxu0
        %v290 = vpop.f32.mrb[0].mxu0
        %v291 = vpop.f32.mrb[0].mxu0
        %292 = vdwg.mxu0
        %v293 = vsel %vm242, -1e+30, %v288
        %v294 = vsel %vm246, %v293, -inf
        %295 = vmax.xlane.f32.xlu0 %v294
        %v296 = vpop.xlane.xlu0 %295
        %v297 = vsub.f32 %v293, %v296
        %v298 = vmul.f32 %v297, 1.442695
        %v299 = vpow.pop %v298
        %v300 = vsel %vm246, %v299, 0.0
        %301 = vadd.xlane.f32.xlu0 %v300
        %v302 = vpop.xlane.xlu0 %301
        %v303 = vrcp.pop %v302
        %v304 = vpack.c.bf16 %v299, %v299
        %305 = vrot.lane.b32.xlu0 %v237, 64
        %v306 = vpop.permute.xlu0 %305
        %v308 = vsel %vm246, %v304, 0
        %vm310 = vcmask 1043456
        %v312 = vsel %vm310, %v306, 0
        %314 = vmatprep.subr.bf16.mxu0 0
        %315 = vmatpush1.bf16.msra.mxu0 %v312
        %316 = vmatprep.subr.bf16.mxu0 0
        %317 = vmatpush1.bf16.msra.mxu0 0
        %318 = vmatprep.subr.bf16.mxu0 0
        %319 = vmatpush1.bf16.msra.mxu0 0
        %320 = vmatprep.subr.bf16.mxu0 0
        %321 = vmatpush1.bf16.msra.mxu0 0
        %322 = vmatprep.subr.bf16.mxu0 0
        %323 = vmatpush1.bf16.msra.mxu0 0
        %324 = vmatprep.subr.bf16.mxu0 0
        %325 = vmatpush1.bf16.msra.mxu0 0
        %326 = vmatprep.subr.bf16.mxu0 0
        %327 = vmatpush1.bf16.msra.mxu0 0
        %328 = vmatprep.subr.bf16.mxu0 0
        %329 = vmatpush1.bf16.msra.mxu0 0
        %330 = vmatprep.subr.bf16.mxu0 0
        %331 = vmatpush1.bf16.msra.mxu0 0
        %332 = vmatprep.subr.bf16.mxu0 0
        %333 = vmatpush1.bf16.msra.mxu0 0
        %334 = vmatprep.subr.bf16.mxu0 0
        %335 = vmatpush1.bf16.msra.mxu0 0
        %336 = vmatprep.subr.bf16.mxu0 0
        %337 = vmatpush1.bf16.msra.mxu0 0
        %338 = vmatprep.subr.bf16.mxu0 0
        %339 = vmatpush1.bf16.msra.mxu0 0
        %340 = vmatprep.subr.bf16.mxu0 0
        %341 = vmatpush1.bf16.msra.mxu0 0
        %342 = vmatprep.subr.bf16.mxu0 0
        %343 = vmatpush1.bf16.msra.mxu0 0
        %344 = vmatprep.subr.bf16.mxu0 0
        %345 = vmatpush1.bf16.msra.mxu0 0
        %346 = vmatprep.mubr.bf16.mxu0 0
        %347 = vmatmul.mubr.bf16.gmra.mrb[0].mxu0 %v308
        %v348 = vpop.f32.mrb[0].mxu0
        %v349 = vadd.f32 0.0, %v348
        %v350 = vpop.f32.mrb[0].mxu0
        %v351 = vpop.f32.mrb[0].mxu0
        %v352 = vpop.f32.mrb[0].mxu0
        %353 = vdwg.mxu0
        %v354 = vmul.f32 %v349, %v303
        %355 = vst.msk [vmem:[%s173] sm:$0xff] %vm246, %v354
        %356 = vrot.lane.b32.xlu0 %v237, 120
        %v357 = vpop.permute.xlu0 %356
        %358 = vrot.lane.b32.xlu0 %v237, 88
        %v359 = vpop.permute.xlu0 %358
        %v361 = vsel %vm246, %v357, 0
        %v364 = vsel %vm246, %v359, 0
        %366 = vmatprep.subr.bf16.mxu0 0
        %367 = vmatpush1.bf16.xpose.msra.mxu0 %v364
        %368 = vmatprep.subr.bf16.mxu0 0
        %369 = vmatpush1.bf16.xpose.msra.mxu0 0
        %370 = vmatprep.subr.bf16.mxu0 0
        %371 = vmatpush1.bf16.xpose.msra.mxu0 0
        %372 = vmatprep.subr.bf16.mxu0 0
        %373 = vmatpush1.bf16.xpose.msra.mxu0 0
        %374 = vmatprep.subr.bf16.mxu0 0
        %375 = vmatpush1.bf16.xpose.msra.mxu0 0
        %376 = vmatprep.subr.bf16.mxu0 0
        %377 = vmatpush1.bf16.xpose.msra.mxu0 0
        %378 = vmatprep.subr.bf16.mxu0 0
        %379 = vmatpush1.bf16.xpose.msra.mxu0 0
        %380 = vmatprep.subr.bf16.mxu0 0
        %381 = vmatpush1.bf16.xpose.msra.mxu0 0
        %382 = vmatprep.subr.bf16.mxu0 0
        %383 = vmatpush1.bf16.xpose.msra.mxu0 0
        %384 = vmatprep.subr.bf16.mxu0 0
        %385 = vmatpush1.bf16.xpose.msra.mxu0 0
        %386 = vmatprep.subr.bf16.mxu0 0
        %387 = vmatpush1.bf16.xpose.msra.mxu0 0
        %388 = vmatprep.subr.bf16.mxu0 0
        %389 = vmatpush1.bf16.xpose.msra.mxu0 0
        %390 = vmatprep.subr.bf16.mxu0 0
        %391 = vmatpush1.bf16.xpose.msra.mxu0 0
        %392 = vmatprep.subr.bf16.mxu0 0
        %393 = vmatpush1.bf16.xpose.msra.mxu0 0
        %394 = vmatprep.subr.bf16.mxu0 0
        %395 = vmatpush1.bf16.xpose.msra.mxu0 0
        %396 = vmatprep.subr.bf16.mxu0 0
        %397 = vmatpush1.bf16.xpose.msra.mxu0 0
        %398 = vmatprep.mubr.bf16.mxu0 0
        %399 = vmatmul.mubr.bf16.gmra.mrb[0].mxu0 %v361
        %v400 = vpop.f32.mrb[0].mxu0
        %v401 = vadd.f32 0.0, %v400
        %v402 = vpop.f32.mrb[0].mxu0
        %v403 = vpop.f32.mrb[0].mxu0
        %v404 = vpop.f32.mrb[0].mxu0
        %405 = vdwg.mxu0
        %v406 = vsel %vm242, -1e+30, %v401
        %v407 = vsel %vm246, %v406, -inf
        %408 = vmax.xlane.f32.xlu0 %v407
        %v409 = vpop.xlane.xlu0 %408
        %v410 = vsub.f32 %v406, %v409
        %v411 = vmul.f32 %v410, 1.442695
        %v412 = vpow.pop %v411
        %v413 = vsel %vm246, %v412, 0.0
        %414 = vadd.xlane.f32.xlu0 %v413
        %v415 = vpop.xlane.xlu0 %414
        %v416 = vrcp.pop %v415
        %v417 = vpack.c.bf16 %v412, %v412
        %418 = vrot.lane.b32.xlu0 %v237, 56
        %v419 = vpop.permute.xlu0 %418
        %v421 = vsel %vm246, %v417, 0
        %v424 = vsel %vm310, %v419, 0
        %426 = vmatprep.subr.bf16.mxu0 0
        %427 = vmatpush1.bf16.msra.mxu0 %v424
        %428 = vmatprep.subr.bf16.mxu0 0
        %429 = vmatpush1.bf16.msra.mxu0 0
        %430 = vmatprep.subr.bf16.mxu0 0
        %431 = vmatpush1.bf16.msra.mxu0 0
        %432 = vmatprep.subr.bf16.mxu0 0
        %433 = vmatpush1.bf16.msra.mxu0 0
        %434 = vmatprep.subr.bf16.mxu0 0
        %435 = vmatpush1.bf16.msra.mxu0 0
        %436 = vmatprep.subr.bf16.mxu0 0
        %437 = vmatpush1.bf16.msra.mxu0 0
        %438 = vmatprep.subr.bf16.mxu0 0
        %439 = vmatpush1.bf16.msra.mxu0 0
        %440 = vmatprep.subr.bf16.mxu0 0
        %441 = vmatpush1.bf16.msra.mxu0 0
        %442 = vmatprep.subr.bf16.mxu0 0
        %443 = vmatpush1.bf16.msra.mxu0 0
        %444 = vmatprep.subr.bf16.mxu0 0
        %445 = vmatpush1.bf16.msra.mxu0 0
        %446 = vmatprep.subr.bf16.mxu0 0
        %447 = vmatpush1.bf16.msra.mxu0 0
        %448 = vmatprep.subr.bf16.mxu0 0
        %449 = vmatpush1.bf16.msra.mxu0 0
        %450 = vmatprep.subr.bf16.mxu0 0
        %451 = vmatpush1.bf16.msra.mxu0 0
        %452 = vmatprep.subr.bf16.mxu0 0
        %453 = vmatpush1.bf16.msra.mxu0 0
        %454 = vmatprep.subr.bf16.mxu0 0
        %455 = vmatpush1.bf16.msra.mxu0 0
        %456 = vmatprep.subr.bf16.mxu0 0
        %457 = vmatpush1.bf16.msra.mxu0 0
        %458 = vmatprep.mubr.bf16.mxu0 0
        %459 = vmatmul.mubr.bf16.gmra.mrb[0].mxu0 %v421
        %v460 = vpop.f32.mrb[0].mxu0
        %v461 = vadd.f32 0.0, %v460
        %v462 = vpop.f32.mrb[0].mxu0
        %v463 = vpop.f32.mrb[0].mxu0
        %v464 = vpop.f32.mrb[0].mxu0
        %465 = vdwg.mxu0
        %v466 = vmul.f32 %v461, %v416
        %468 = vrot.lane.b32.xlu0 %v466, 8
        %v469 = vpop.permute.xlu0 %468
        %vm471 = vcmask 130112
        %472 = vst.msk [vmem:[%s173] sm:$0xff] %vm471, %v469
        %473 = vrot.lane.b32.xlu0 %v237, 112
        %v474 = vpop.permute.xlu0 %473
        %475 = vrot.lane.b32.xlu0 %v237, 80
        %v476 = vpop.permute.xlu0 %475
        %v478 = vsel %vm246, %v474, 0
        %v481 = vsel %vm246, %v476, 0
        %483 = vmatprep.subr.bf16.mxu0 0
        %484 = vmatpush1.bf16.xpose.msra.mxu0 %v481
        %485 = vmatprep.subr.bf16.mxu0 0
        %486 = vmatpush1.bf16.xpose.msra.mxu0 0
        %487 = vmatprep.subr.bf16.mxu0 0
        %488 = vmatpush1.bf16.xpose.msra.mxu0 0
        %489 = vmatprep.subr.bf16.mxu0 0
        %490 = vmatpush1.bf16.xpose.msra.mxu0 0
        %491 = vmatprep.subr.bf16.mxu0 0
        %492 = vmatpush1.bf16.xpose.msra.mxu0 0
        %493 = vmatprep.subr.bf16.mxu0 0
        %494 = vmatpush1.bf16.xpose.msra.mxu0 0
        %495 = vmatprep.subr.bf16.mxu0 0
        %496 = vmatpush1.bf16.xpose.msra.mxu0 0
        %497 = vmatprep.subr.bf16.mxu0 0
        %498 = vmatpush1.bf16.xpose.msra.mxu0 0
        %499 = vmatprep.subr.bf16.mxu0 0
        %500 = vmatpush1.bf16.xpose.msra.mxu0 0
        %501 = vmatprep.subr.bf16.mxu0 0
        %502 = vmatpush1.bf16.xpose.msra.mxu0 0
        %503 = vmatprep.subr.bf16.mxu0 0
        %504 = vmatpush1.bf16.xpose.msra.mxu0 0
        %505 = vmatprep.subr.bf16.mxu0 0
        %506 = vmatpush1.bf16.xpose.msra.mxu0 0
        %507 = vmatprep.subr.bf16.mxu0 0
        %508 = vmatpush1.bf16.xpose.msra.mxu0 0
        %509 = vmatprep.subr.bf16.mxu0 0
        %510 = vmatpush1.bf16.xpose.msra.mxu0 0
        %511 = vmatprep.subr.bf16.mxu0 0
        %512 = vmatpush1.bf16.xpose.msra.mxu0 0
        %513 = vmatprep.subr.bf16.mxu0 0
        %514 = vmatpush1.bf16.xpose.msra.mxu0 0
        %515 = vmatprep.mubr.bf16.mxu0 0
        %516 = vmatmul.mubr.bf16.gmra.mrb[0].mxu0 %v478
        %v517 = vpop.f32.mrb[0].mxu0
        %v518 = vadd.f32 0.0, %v517
        %v519 = vpop.f32.mrb[0].mxu0
        %v520 = vpop.f32.mrb[0].mxu0
        %v521 = vpop.f32.mrb[0].mxu0
        %522 = vdwg.mxu0
        %v523 = vsel %vm242, -1e+30, %v518
        %v524 = vsel %vm246, %v523, -inf
        %525 = vmax.xlane.f32.xlu0 %v524
        %v526 = vpop.xlane.xlu0 %525
        %v527 = vsub.f32 %v523, %v526
        %v528 = vmul.f32 %v527, 1.442695
        %v529 = vpow.pop %v528
        %v530 = vsel %vm246, %v529, 0.0
        %531 = vadd.xlane.f32.xlu0 %v530
        %v532 = vpop.xlane.xlu0 %531
        %v533 = vrcp.pop %v532
        %v534 = vpack.c.bf16 %v529, %v529
        %535 = vrot.lane.b32.xlu0 %v237, 48
        %v536 = vpop.permute.xlu0 %535
        %v538 = vsel %vm246, %v534, 0
        %v541 = vsel %vm310, %v536, 0
        %543 = vmatprep.subr.bf16.mxu0 0
        %544 = vmatpush1.bf16.msra.mxu0 %v541
        %545 = vmatprep.subr.bf16.mxu0 0
        %546 = vmatpush1.bf16.msra.mxu0 0
        %547 = vmatprep.subr.bf16.mxu0 0
        %548 = vmatpush1.bf16.msra.mxu0 0
        %549 = vmatprep.subr.bf16.mxu0 0
        %550 = vmatpush1.bf16.msra.mxu0 0
        %551 = vmatprep.subr.bf16.mxu0 0
        %552 = vmatpush1.bf16.msra.mxu0 0
        %553 = vmatprep.subr.bf16.mxu0 0
        %554 = vmatpush1.bf16.msra.mxu0 0
        %555 = vmatprep.subr.bf16.mxu0 0
        %556 = vmatpush1.bf16.msra.mxu0 0
        %557 = vmatprep.subr.bf16.mxu0 0
        %558 = vmatpush1.bf16.msra.mxu0 0
        %559 = vmatprep.subr.bf16.mxu0 0
        %560 = vmatpush1.bf16.msra.mxu0 0
        %561 = vmatprep.subr.bf16.mxu0 0
        %562 = vmatpush1.bf16.msra.mxu0 0
        %563 = vmatprep.subr.bf16.mxu0 0
        %564 = vmatpush1.bf16.msra.mxu0 0
        %565 = vmatprep.subr.bf16.mxu0 0
        %566 = vmatpush1.bf16.msra.mxu0 0
        %567 = vmatprep.subr.bf16.mxu0 0
        %568 = vmatpush1.bf16.msra.mxu0 0
        %569 = vmatprep.subr.bf16.mxu0 0
        %570 = vmatpush1.bf16.msra.mxu0 0
        %571 = vmatprep.subr.bf16.mxu0 0
        %572 = vmatpush1.bf16.msra.mxu0 0
        %573 = vmatprep.subr.bf16.mxu0 0
        %574 = vmatpush1.bf16.msra.mxu0 0
        %575 = vmatprep.mubr.bf16.mxu0 0
        %576 = vmatmul.mubr.bf16.gmra.mrb[0].mxu0 %v538
        %v577 = vpop.f32.mrb[0].mxu0
        %v578 = vadd.f32 0.0, %v577
        %v579 = vpop.f32.mrb[0].mxu0
        %v580 = vpop.f32.mrb[0].mxu0
        %v581 = vpop.f32.mrb[0].mxu0
        %582 = vdwg.mxu0
        %v583 = vmul.f32 %v578, %v533
        %585 = vrot.lane.b32.xlu0 %v583, 16
        %v586 = vpop.permute.xlu0 %585
        %vm588 = vcmask 195712
        %589 = vst.msk [vmem:[%s173] sm:$0xff] %vm588, %v586
        %590 = vrot.lane.b32.xlu0 %v237, 104
        %v591 = vpop.permute.xlu0 %590
        %592 = vrot.lane.b32.xlu0 %v237, 72
        %v593 = vpop.permute.xlu0 %592
        %v595 = vsel %vm246, %v591, 0
        %v598 = vsel %vm246, %v593, 0
        %600 = vmatprep.subr.bf16.mxu0 0
        %601 = vmatpush1.bf16.xpose.msra.mxu0 %v598
        %602 = vmatprep.subr.bf16.mxu0 0
        %603 = vmatpush1.bf16.xpose.msra.mxu0 0
        %604 = vmatprep.subr.bf16.mxu0 0
        %605 = vmatpush1.bf16.xpose.msra.mxu0 0
        %606 = vmatprep.subr.bf16.mxu0 0
        %607 = vmatpush1.bf16.xpose.msra.mxu0 0
        %608 = vmatprep.subr.bf16.mxu0 0
        %609 = vmatpush1.bf16.xpose.msra.mxu0 0
        %610 = vmatprep.subr.bf16.mxu0 0
        %611 = vmatpush1.bf16.xpose.msra.mxu0 0
        %612 = vmatprep.subr.bf16.mxu0 0
        %613 = vmatpush1.bf16.xpose.msra.mxu0 0
        %614 = vmatprep.subr.bf16.mxu0 0
        %615 = vmatpush1.bf16.xpose.msra.mxu0 0
        %616 = vmatprep.subr.bf16.mxu0 0
        %617 = vmatpush1.bf16.xpose.msra.mxu0 0
        %618 = vmatprep.subr.bf16.mxu0 0
        %619 = vmatpush1.bf16.xpose.msra.mxu0 0
        %620 = vmatprep.subr.bf16.mxu0 0
        %621 = vmatpush1.bf16.xpose.msra.mxu0 0
        %622 = vmatprep.subr.bf16.mxu0 0
        %623 = vmatpush1.bf16.xpose.msra.mxu0 0
        %624 = vmatprep.subr.bf16.mxu0 0
        %625 = vmatpush1.bf16.xpose.msra.mxu0 0
        %626 = vmatprep.subr.bf16.mxu0 0
        %627 = vmatpush1.bf16.xpose.msra.mxu0 0
        %628 = vmatprep.subr.bf16.mxu0 0
        %629 = vmatpush1.bf16.xpose.msra.mxu0 0
        %630 = vmatprep.subr.bf16.mxu0 0
        %631 = vmatpush1.bf16.xpose.msra.mxu0 0
        %632 = vmatprep.mubr.bf16.mxu0 0
        %633 = vmatmul.mubr.bf16.gmra.mrb[0].mxu0 %v595
        %v634 = vpop.f32.mrb[0].mxu0
        %v635 = vadd.f32 0.0, %v634
        %v636 = vpop.f32.mrb[0].mxu0
        %v637 = vpop.f32.mrb[0].mxu0
        %v638 = vpop.f32.mrb[0].mxu0
        %639 = vdwg.mxu0
        %v640 = vsel %vm242, -1e+30, %v635
        %v641 = vsel %vm246, %v640, -inf
        %642 = vmax.xlane.f32.xlu0 %v641
        %v643 = vpop.xlane.xlu0 %642
        %v644 = vsub.f32 %v640, %v643
        %v645 = vmul.f32 %v644, 1.442695
        %v646 = vpow.pop %v645
        %v647 = vsel %vm246, %v646, 0.0
        %648 = vadd.xlane.f32.xlu0 %v647
        %v649 = vpop.xlane.xlu0 %648
        %v650 = vrcp.pop %v649
        %v651 = vpack.c.bf16 %v646, %v646
        %652 = vrot.lane.b32.xlu0 %v237, 40
        %v653 = vpop.permute.xlu0 %652
        %v655 = vsel %vm246, %v651, 0
        %v658 = vsel %vm310, %v653, 0
        %660 = vmatprep.subr.bf16.mxu0 0
        %661 = vmatpush1.bf16.msra.mxu0 %v658
        %662 = vmatprep.subr.bf16.mxu0 0
        %663 = vmatpush1.bf16.msra.mxu0 0
        %664 = vmatprep.subr.bf16.mxu0 0
        %665 = vmatpush1.bf16.msra.mxu0 0
        %666 = vmatprep.subr.bf16.mxu0 0
        %667 = vmatpush1.bf16.msra.mxu0 0
        %668 = vmatprep.subr.bf16.mxu0 0
        %669 = vmatpush1.bf16.msra.mxu0 0
        %670 = vmatprep.subr.bf16.mxu0 0
        %671 = vmatpush1.bf16.msra.mxu0 0
        %672 = vmatprep.subr.bf16.mxu0 0
        %673 = vmatpush1.bf16.msra.mxu0 0
        %674 = vmatprep.subr.bf16.mxu0 0
        %675 = vmatpush1.bf16.msra.mxu0 0
        %676 = vmatprep.subr.bf16.mxu0 0
        %677 = vmatpush1.bf16.msra.mxu0 0
        %678 = vmatprep.subr.bf16.mxu0 0
        %679 = vmatpush1.bf16.msra.mxu0 0
        %680 = vmatprep.subr.bf16.mxu0 0
        %681 = vmatpush1.bf16.msra.mxu0 0
        %682 = vmatprep.subr.bf16.mxu0 0
        %683 = vmatpush1.bf16.msra.mxu0 0
        %684 = vmatprep.subr.bf16.mxu0 0
        %685 = vmatpush1.bf16.msra.mxu0 0
        %686 = vmatprep.subr.bf16.mxu0 0
        %687 = vmatpush1.bf16.msra.mxu0 0
        %688 = vmatprep.subr.bf16.mxu0 0
        %689 = vmatpush1.bf16.msra.mxu0 0
        %690 = vmatprep.subr.bf16.mxu0 0
        %691 = vmatpush1.bf16.msra.mxu0 0
        %692 = vmatprep.mubr.bf16.mxu0 0
        %693 = vmatmul.mubr.bf16.gmra.mrb[0].mxu0 %v655
        %v694 = vpop.f32.mrb[0].mxu0
        %v695 = vadd.f32 0.0, %v694
        %v696 = vpop.f32.mrb[0].mxu0
        %v697 = vpop.f32.mrb[0].mxu0
        %v698 = vpop.f32.mrb[0].mxu0
        %699 = vdwg.mxu0
        %v700 = vmul.f32 %v695, %v650
        %702 = vrot.lane.b32.xlu0 %v700, 24
        %v703 = vpop.permute.xlu0 %702
        %vm705 = vcmask 261312
        %706 = vst.msk [vmem:[%s173] sm:$0xff] %vm705, %v703
        %s707 = sand.u32 %s75, 1
        %s708 = scalar_lea.sflag [#allocation4], %s707
        %s709 = sand.u32 %s75, 1
        %s710 = smul.addr %s709, 8
        %s711 = scalar_lea.vmem [#allocation7], %s710
        // Predicated region
        $region37: #{tpu_custom_call.1} parent=27 // pred_check
          %p712 = pneg %p85
        $region38: #{tpu_custom_call.1} parent=27 // pred_check_branch
          %714 = sbr.rel (%p712) target = $region40
        $region39: #{tpu_custom_call.1} parent=27 // pred_region
          %s716 = ssub.s32 128, 128
          %717 = vsyncadd %s708, %s716
          %s718 = smul.addr %s20, 128
          %s719 = scalar_lea.hbm %s2, %s718
          %s721 = sshll.u32 %s711, 4
          %s722 = int_to_ptr.vmem [resolvable:$true] %s721
          %724 = dma.vmem_to_hbm [thread:$0]  %s722, 128, %s719, %s708
        $region40: #{tpu_custom_call.1} parent=27 // pred_fallthru
          _
      $region28: #{tpu_custom_call.1} parent=5 // pred_fallthru
        _
      %p725 = scmp.le.s32.totalorder 2, %s15
      // Predicated region
      $region41: #{tpu_custom_call.1} parent=5 // pred_check
        %p726 = pneg %p725
      $region42: #{tpu_custom_call.1} parent=5 // pred_check_branch
        %728 = sbr.rel (%p726) target = $region44
      $region43: #{tpu_custom_call.1} parent=5 // pred_region
        %s729 = ssub.s32 %s15, 2
        // Predicated region
        $region45: #{tpu_custom_call.1} parent=43 // pred_check
          %p730 = pneg %p91
        $region46: #{tpu_custom_call.1} parent=43 // pred_check_branch
          %732 = sbr.rel (%p730) target = $region48
        $region47: #{tpu_custom_call.1} parent=43 // pred_region
          %s733 = sand.u32 %s76, 1
          %s734 = scalar_lea.sflag [#allocation4], %s733
          %s735 = sand.u32 %s76, 1
          %s736 = smul.addr %s735, 8
          %s737 = scalar_lea.vmem [#allocation7], %s736
          %738 = dma.done %s734, 128
        $region48: #{tpu_custom_call.1} parent=43 // pred_fallthru
          _
      $region44: #{tpu_custom_call.1} parent=5 // pred_fallthru
        _
    $region6: #{tpu_custom_call.1} parent=1 // loop_footer
      %s19 = sadd.s32 1, %s15
    $region7: #{tpu_custom_call.1} parent=1 // loop_footer_branch
      %14 = sbr.rel target = $region3
    $region8: #{tpu_custom_call.1} parent=1 // loop_exit
      _
    %739 = vsyncpa [#allocation3], 1
    %s740 = scalar_lea.sflag [#allocation3], 1
    %741 = vsyncpa %s740, 1
    %742 = vsyncpa [#allocation6], 1
    %743 = vsyncpa [#allocation4], 1
    %s744 = scalar_lea.sflag [#allocation4], 1
    %745 = vsyncpa %s744, 1

</llo_original>
